<compile_context>
chip_gen: v7x
topology: tpu7x:2x2x1
jax: 0.10.0
libtpu: 0.0.40
codegen_flags: <defaults>
</compile_context>

<pallas_src>
import jax
import jax.numpy as jnp
from jax import lax
from jax.experimental import pallas as pl
from jax.experimental.pallas import tpu as pltpu

NEG_INF = -1e6  # same fill value as d2l's masked_softmax


# ------------------------------ small helpers --------------------------------

def _pick_tile(dim, prefs):
    """Largest preferred tile that divides `dim` exactly, else the full dim.

    Exact division avoids out-of-bounds boundary blocks (no garbage K-tails);
    preferred sizes are multiples of 128 so sub-full blocks satisfy the (8,128)
    tiling constraint on the minor dims.
    """
    for t in prefs:
        if dim % t == 0:
            return t
    return dim


def _vmem_limit_bytes():
    """Per-generation scoped-VMEM cap: headroom below physical VMEM."""
    try:
        kind = jax.devices()[0].device_kind.lower()
    except Exception:
        kind = ""
    if ("v5 lite" in kind) or ("v5e" in kind) or ("v6" in kind):
        return 96 * 1024 * 1024   # 128 MiB physical on v5e / v6e
    return 48 * 1024 * 1024       # 64 MiB physical on v7x (safe default elsewhere)


# --------------------------- tiled linear (matmul) ---------------------------

def _matmul_kernel(x_ref, w_ref, o_ref, acc_ref):
    @pl.when(pl.program_id(2) == 0)
    def _():
        acc_ref[...] = jnp.zeros_like(acc_ref)

    acc_ref[...] += jnp.dot(
        x_ref[...], w_ref[...], preferred_element_type=jnp.float32)

    @pl.when(pl.program_id(2) == pl.num_programs(2) - 1)
    def _():
        o_ref[...] = acc_ref[...].astype(o_ref.dtype)


def pallas_linear(x2d, w, *, tile_prefs=(512, 256, 128)):
    """x2d: (M, Kin) @ w: (Kin, N) -> (M, N), tiled + pipelined Pallas matmul."""
    M, Kin = x2d.shape
    _, N = w.shape
    tm = _pick_tile(M, tile_prefs)
    tn = _pick_tile(N, tile_prefs)
    tk = _pick_tile(Kin, tile_prefs)
    grid = (M // tm, N // tn, Kin // tk)
    return pl.pallas_call(
        _matmul_kernel,
        out_shape=jax.ShapeDtypeStruct((M, N), x2d.dtype),
        grid_spec=pltpu.PrefetchScalarGridSpec(
            num_scalar_prefetch=0,
            grid=grid,
            in_specs=[
                pl.BlockSpec((tm, tk), lambda i, j, k: (i, k)),
                pl.BlockSpec((tk, tn), lambda i, j, k: (k, j)),
            ],
            out_specs=pl.BlockSpec((tm, tn), lambda i, j, k: (i, j)),
            scratch_shapes=[pltpu.VMEM((tm, tn), jnp.float32)],
        ),
        compiler_params=pltpu.CompilerParams(
            dimension_semantics=("parallel", "parallel", "arbitrary"),
            vmem_limit_bytes=_vmem_limit_bytes(),
        ),
    )(x2d, w)


# -------------- fused additive multi-head attention + W_o kernel --------------

def _attn_wo_kernel(vl_ref, qh_ref, kh_ref, v_ref, wv_ref, wo_ref, o_ref,
                    m_scr, l_scr, acc_scr):
    """One (batch, q-tile, k-tile) step, all heads at once.

    qh_ref: (1, HA, tq)    additive-attention query features (Wa_q folded into W_q),
                           feature-major so Q/K can sit on sublanes/lanes.
    kh_ref: (1, HA, tk)    key features.
    v_ref : (1, nh, tk, Dh) head-major value projections.
    wv_ref: (HA, 1)        wa_v replicated per head along the feature axis.
    wo_ref: (nh, Dh, H)    W_o rows grouped by input head (fused output projection).
    o_ref : (1, tq, H)     lane-dense output of the whole block (attention + W_o).
    scratch: m/l (nh, tq, 1), acc (nh, tq, Dh)  — online-softmax state over K tiles.
    """
    b = pl.program_id(0)
    ki = pl.program_id(2)
    n_k = pl.num_programs(2)

    nh, tk = v_ref.shape[1], v_ref.shape[2]
    ha_all, tq = qh_ref.shape[1], qh_ref.shape[2]
    ha = ha_all // nh
    hid = wo_ref.shape[2]

    valid_len = vl_ref[b]        # all heads of one batch share the same mask
    base_k = ki * tk

    @pl.when(ki == 0)
    def _():
        m_scr[...] = jnp.full_like(m_scr, -jnp.inf)
        l_scr[...] = jnp.zeros_like(l_scr)
        acc_scr[...] = jnp.zeros_like(acc_scr)

    # Skip fully masked K tiles entirely: the tanh (EUP) work is the binding unit.
    # Tile 0 always runs so the softmax denominator stays > 0 (for valid_len == 0
    # the reference degenerates to a uniform average; we match it over tile 0).
    @pl.when((ki == 0) | (base_k < valid_len))
    def _():
        q_t = qh_ref[0]          # (HA, tq)
        k_t = kh_ref[0]          # (HA, tk)
        v = v_ref[0]             # (nh, tk, Dh)

        # Additive-attention features, K lane-dense: (HA, tq, tk).        [EUP]
        feat = jnp.tanh(q_t[:, :, None] + k_t[:, None, :])
        # wa_v weighting on the VPU; per-head score reduction is a free
        # leading-axis segment sum (no MXU, no block-diagonal zeros).
        wfeat = feat * wv_ref[...][:, :, None]                    # (HA, tq, tk)
        scores = wfeat.reshape(nh, ha, tq, tk).sum(axis=1)        # (nh, tq, tk)

        # Masked online softmax, batched over all (head, q) rows; K on lanes.
        kidx = base_k + lax.broadcasted_iota(jnp.int32, (nh, tq, tk), 2)
        scores = jnp.where(kidx < valid_len, scores, NEG_INF)

        m_prev = m_scr[...]
        m_new = jnp.maximum(m_prev, scores.max(axis=-1, keepdims=True))
        alpha = jnp.exp(m_prev - m_new)
        p = jnp.exp(scores - m_new)
        l_scr[...] = alpha * l_scr[...] + p.sum(axis=-1, keepdims=True)
        acc_scr[...] = alpha * acc_scr[...] + jnp.einsum(
            "hqk,hkd->hqd", p, v, preferred_element_type=jnp.float32)
        m_scr[...] = m_new

    @pl.when(ki == n_k - 1)
    def _():
        # Exact normalization: one divide per output tile -> effectively free.
        out_h = acc_scr[...] * (1.0 / l_scr[...])                 # (nh, tq, Dh)
        # Fused W_o: nh accumulating (tq,Dh)@(Dh,H) matmuls -> full H output lanes,
        # no head-merge relayout, no extra pallas_call / HBM round trip.
        acc_o = jnp.zeros((tq, hid), jnp.float32)
        for h in range(nh):
            acc_o = acc_o + jnp.dot(out_h[h], wo_ref[h],
                                    preferred_element_type=jnp.float32)
        o_ref[0] = acc_o.astype(o_ref.dtype)


def pallas_additive_mha_wo(qh_t, kh_t, v_heads, valid_lens, wv_col, wo_heads):
    """Fused additive multi-head attention + output projection.

    qh_t: (B, HA, Q), kh_t: (B, HA, K), v_heads: (B, nh, K, Dh),
    valid_lens: (B,) int32, wv_col: (HA, 1), wo_heads: (nh, Dh, H) -> (B, Q, H).
    """
    B, HA, Q = qh_t.shape
    K = kh_t.shape[2]
    nh, Dh, H = wo_heads.shape

    # Tile sizes keep the f32 (HA, tq, tk) feature slab well under VMEM on every
    # generation (v7x has 64 MiB physical); prefs are multiples of 128 so sub-full
    # lane-dim blocks stay legal, and only exact divisors are used (no OOB tails).
    tq = _pick_tile(Q, (128,))
    tk = _pick_tile(K, (256, 128))
    grid = (B, Q // tq, K // tk)

    grid_spec = pltpu.PrefetchScalarGridSpec(
        num_scalar_prefetch=1,
        grid=grid,
        in_specs=[
            pl.BlockSpec((1, HA, tq), lambda b, qi, ki, vl: (b, 0, qi)),
            pl.BlockSpec((1, HA, tk), lambda b, qi, ki, vl: (b, 0, ki)),
            pl.BlockSpec((1, nh, tk, Dh), lambda b, qi, ki, vl: (b, 0, ki, 0)),
            pl.BlockSpec((HA, 1), lambda b, qi, ki, vl: (0, 0)),
            pl.BlockSpec((nh, Dh, H), lambda b, qi, ki, vl: (0, 0, 0)),
        ],
        out_specs=pl.BlockSpec((1, tq, H), lambda b, qi, ki, vl: (b, qi, 0)),
        scratch_shapes=[
            pltpu.VMEM((nh, tq, 1), jnp.float32),    # running max
            pltpu.VMEM((nh, tq, 1), jnp.float32),    # running denominator
            pltpu.VMEM((nh, tq, Dh), jnp.float32),   # running PV accumulator
        ],
    )
    return pl.pallas_call(
        _attn_wo_kernel,
        out_shape=jax.ShapeDtypeStruct((B, Q, H), qh_t.dtype),
        grid_spec=grid_spec,
        compiler_params=pltpu.CompilerParams(
            # batch / q-tiles are independent (keeps both v7x TCs busy at small B);
            # the K axis is the online-softmax reduction.
            dimension_semantics=("parallel", "parallel", "arbitrary"),
            vmem_limit_bytes=_vmem_limit_bytes(),
        ),
    )(valid_lens, qh_t, kh_t, v_heads, wv_col, wo_heads)


# ------------------------------ JAX glue / wrapper ----------------------------

def _fold_attn_proj(W, Wa, num_heads):
    """Compose per-head slices of W (In, nh*Dh) with Wa (Dh, Ha) -> (In, nh*Ha)."""
    In, _ = W.shape
    Dh, Ha = Wa.shape
    Wr = W.reshape(In, num_heads, Dh)
    return jnp.einsum("ihd,da->iha", Wr, Wa).reshape(In, num_heads * Ha)


def multi_head_attention_a(params, queries, keys, values, valid_lens, num_heads):
    B, Q, _ = queries.shape
    _, K, _ = keys.shape
    H = params["W_q"].shape[1]
    Dh = H // num_heads
    Ha = params["Wa_q"].shape[1]
    HA = num_heads * Ha

    # Host-side (tiny) parameter prep: fold Wa_q/Wa_k into W_q/W_k, replicate wa_v
    # per head, split W_o rows by input head for the fused output projection.
    W_qa = _fold_attn_proj(params["W_q"], params["Wa_q"], num_heads)
    W_ka = _fold_attn_proj(params["W_k"], params["Wa_k"], num_heads)
    wv_col = jnp.tile(params["wa_v"], (1, num_heads)).reshape(HA, 1)
    wo_heads = params["W_o"].reshape(num_heads, Dh, H)

    # Input projections (tiled Pallas matmuls).
    qh_all = pallas_linear(queries.reshape(B * Q, -1), W_qa).reshape(B, Q, HA)
    kh_all = pallas_linear(keys.reshape(B * K, -1), W_ka).reshape(B, K, HA)
    v_all = pallas_linear(values.reshape(B * K, -1), params["W_v"]).reshape(B, K, H)

    # Feature-major q/k (so Q/K sit on sublanes/lanes inside the kernel) and
    # head-major V.  These relayouts are O(B*S*H) — negligible vs O(B*Q*K*HA).
    qh_t = jnp.swapaxes(qh_all, 1, 2)                                  # (B, HA, Q)
    kh_t = jnp.swapaxes(kh_all, 1, 2)                                  # (B, HA, K)
    v_heads = jnp.swapaxes(v_all.reshape(B, K, num_heads, Dh), 1, 2)   # (B,nh,K,Dh)

    if valid_lens is not None:
        vl = valid_lens.astype(jnp.int32)
    else:
        vl = jnp.full((B,), K, jnp.int32)

    return pallas_additive_mha_wo(qh_t, kh_t, v_heads, vl, wv_col, wo_heads)


# ----------------------- pure-jnp reference (PyTorch spec) --------------------

def transpose_qkv(x, num_heads):
    B, S, H = x.shape
    x = x.reshape(B, S, num_heads, H // num_heads)
    x = jnp.transpose(x, (0, 2, 1, 3))
    return x.reshape(B * num_heads, S, H // num_heads)


def transpose_output(x, num_heads):
    BH, S, Dh = x.shape
    x = x.reshape(BH // num_heads, num_heads, S, Dh)
    x = jnp.transpose(x, (0, 2, 1, 3))
    return x.reshape(x.shape[0], S, num_heads * Dh)


def reference_forward(params, queries, keys, values, valid_lens, num_heads):
    q = transpose_qkv(queries @ params["W_q"], num_heads)
    k = transpose_qkv(keys @ params["W_k"], num_heads)
    v = transpose_qkv(values @ params["W_v"], num_heads)
    vl = jnp.repeat(valid_lens.astype(jnp.int32), num_heads)

    qh = q @ params["Wa_q"]                                   # (BH, Q, Ha)
    kh = k @ params["Wa_k"]                                   # (BH, K, Ha)
    feat = jnp.tanh(qh[:, :, None, :] + kh[:, None, :, :])    # (BH, Q, K, Ha)
    scores = jnp.sum(feat * params["wa_v"][0], axis=-1)       # (BH, Q, K)
    kidx = jnp.arange(scores.shape[-1])[None, None, :]
    scores = jnp.where(kidx < vl[:, None, None], scores, NEG_INF)
    probs = jax.nn.softmax(scores, axis=-1)
    out = jnp.einsum("bqk,bkd->bqd", probs, v)
    out_concat = transpose_output(out, num_heads)
    return out_concat @ params["W_o"]


# ------------------------------------ main ------------------------------------

if __name__ == "__main__":
    B, Q, K = 2, 4, 6
    query_size, key_size, value_size = 20, 24, 28
    num_hiddens, num_heads = 32, 4
    d_head = num_hiddens // num_heads
    h_att = num_hiddens // num_heads   # AdditiveAttention hidden size

    key = jax.random.PRNGKey(0)
    ks = jax.random.split(key, 10)
    scale = 0.1
    params = {
        "W_q": scale * jax.random.normal(ks[0], (query_size, num_hiddens), jnp.float32),
        "W_k": scale * jax.random.normal(ks[1], (key_size, num_hiddens), jnp.float32),
        "W_v": scale * jax.random.normal(ks[2], (value_size, num_hiddens), jnp.float32),
        "W_o": scale * jax.random.normal(ks[3], (num_hiddens, num_hiddens), jnp.float32),
        "Wa_q": scale * jax.random.normal(ks[4], (d_head, h_att), jnp.float32),
        "Wa_k": scale * jax.random.normal(ks[5], (d_head, h_att), jnp.float32),
        "wa_v": scale * jax.random.normal(ks[6], (1, h_att), jnp.float32),
    }

    queries = jax.random.normal(ks[7], (B, Q, query_size), jnp.float32)
    keys_in = jax.random.normal(ks[8], (B, K, key_size), jnp.float32)
    values_in = jax.random.normal(ks[9], (B, K, value_size), jnp.float32)
    valid_lens = jnp.array([6, 3], dtype=jnp.int32)

    out = multi_head_attention_a(params, queries, keys_in, values_in,
                                 valid_lens, num_heads)
    out = jax.block_until_ready(out)

    ref = reference_forward(params, queries, keys_in, values_in, valid_lens,
                            num_heads)
    ref = jax.block_until_ready(ref)

    assert out.shape == (B, Q, num_hiddens)
    # Tolerance covers f32-matmul pass/ordering differences (MXU vs XLA einsum).
    assert jnp.allclose(out, ref, atol=2e-3, rtol=2e-3), (
        f"max err {jnp.max(jnp.abs(out - ref))}")

    print("KERNEL_OK")
</pallas_src>

<mosaic_0001>
module attributes {stable_mosaic.version = 11 : i64} {
  func.func @_matmul_kernel(%arg0: i32, %arg1: i32, %arg2: i32, %arg3: memref<8x20xf32, #tpu.memory_space<vmem>>, %arg4: memref<20x32xf32, #tpu.memory_space<vmem>>, %arg5: memref<8x32xf32, #tpu.memory_space<vmem>>, %arg6: memref<8x32xf32, #tpu.memory_space<vmem>>) attributes {dimension_semantics = [#tpu.dimension_semantics<parallel>, #tpu.dimension_semantics<parallel>, #tpu.dimension_semantics<arbitrary>], iteration_bounds = array<i64: 1, 1, 1>, scalar_prefetch = 0 : i64, scratch_operands = 1 : i64, tpu.core_type = #tpu.core_type<tc>, window_params = [{transform_indices = @transform_0, window_bounds = array<i64: 8, 20>}, {transform_indices = @transform_1, window_bounds = array<i64: 20, 32>}, {transform_indices = @transform_2, window_bounds = array<i64: 8, 32>}]} {
    %c0_i32 = arith.constant 0 : i32
    %0 = arith.cmpi eq, %arg2, %c0_i32 : i32
    %1 = arith.extui %0 : i1 to i32
    %c0_i32_0 = arith.constant 0 : i32
    %2 = arith.cmpi ne, %1, %c0_i32_0 : i32
    scf.if %2 {
      %cst_10 = arith.constant 0.000000e+00 : f32
      %12 = vector.broadcast %cst_10 : f32 to vector<8x32xf32>
      %c0_11 = arith.constant 0 : index
      %c0_12 = arith.constant 0 : index
      %13 = vector.load %arg6[%c0_11, %c0_12] : memref<8x32xf32, #tpu.memory_space<vmem>>, vector<8x32xf32>
      tpu.vector_store %arg6[%c0_11, %c0_12], %12 {strides = array<i32>} : memref<8x32xf32, #tpu.memory_space<vmem>>, vector<8x32xf32>,
    } else {
    }
    %c0 = arith.constant 0 : index
    %c0_1 = arith.constant 0 : index
    %3 = vector.load %arg6[%c0, %c0_1] : memref<8x32xf32, #tpu.memory_space<vmem>>, vector<8x32xf32>
    %c0_2 = arith.constant 0 : index
    %c0_3 = arith.constant 0 : index
    %4 = vector.load %arg3[%c0_2, %c0_3] : memref<8x20xf32, #tpu.memory_space<vmem>>, vector<8x20xf32>
    %c0_4 = arith.constant 0 : index
    %c0_5 = arith.constant 0 : index
    %5 = vector.load %arg4[%c0_4, %c0_5] : memref<20x32xf32, #tpu.memory_space<vmem>>, vector<20x32xf32>
    %cst = arith.constant dense<0.000000e+00> : vector<8x32xf32>
    %6 = tpu.matmul %4, %5, %cst {dimension_numbers = #tpu.dot_dimension_numbers<[1], [0], [0], [1], [0, 0, 1, 1], [], []>} : vector<8x20xf32>, vector<20x32xf32>, vector<8x32xf32> -> vector<8x32xf32>
    %7 = arith.addf %3, %6 : vector<8x32xf32>
    %c0_6 = arith.constant 0 : index
    %c0_7 = arith.constant 0 : index
    %8 = vector.load %arg6[%c0_6, %c0_7] : memref<8x32xf32, #tpu.memory_space<vmem>>, vector<8x32xf32>
    tpu.vector_store %arg6[%c0_6, %c0_7], %7 {strides = array<i32>} : memref<8x32xf32, #tpu.memory_space<vmem>>, vector<8x32xf32>,
    %c0_i32_8 = arith.constant 0 : i32
    %9 = arith.cmpi eq, %arg2, %c0_i32_8 : i32
    %10 = arith.extui %9 : i1 to i32
    %c0_i32_9 = arith.constant 0 : i32
    %11 = arith.cmpi ne, %10, %c0_i32_9 : i32
    scf.if %11 {
      %c0_10 = arith.constant 0 : index
      %c0_11 = arith.constant 0 : index
      %12 = vector.load %arg6[%c0_10, %c0_11] : memref<8x32xf32, #tpu.memory_space<vmem>>, vector<8x32xf32>
      %c0_12 = arith.constant 0 : index
      %c0_13 = arith.constant 0 : index
      %13 = vector.load %arg5[%c0_12, %c0_13] : memref<8x32xf32, #tpu.memory_space<vmem>>, vector<8x32xf32>
      tpu.vector_store %arg5[%c0_12, %c0_13], %12 {strides = array<i32>} : memref<8x32xf32, #tpu.memory_space<vmem>>, vector<8x32xf32>,
    } else {
    }
    return
  }
  func.func @transform_0(%arg0: i32, %arg1: i32, %arg2: i32) -> (i32, i32) {
    %c0_i32 = arith.constant 0 : i32
    return %arg0, %arg2 : i32, i32
  }
  func.func @transform_1(%arg0: i32, %arg1: i32, %arg2: i32) -> (i32, i32) {
    %c0_i32 = arith.constant 0 : i32
    return %arg2, %arg1 : i32, i32
  }
  func.func @transform_2(%arg0: i32, %arg1: i32, %arg2: i32) -> (i32, i32) {
    %c0_i32 = arith.constant 0 : i32
    return %arg0, %arg1 : i32, i32
  }
}

</mosaic_0001>

<llo_original>
// kernel: tpu_custom_call.1
$region0: #{tpu_custom_call.1}
  #allocation0 [shape = 'u32[]', space=smem, size = 0x4, offset = 0x4, fixed_abs, tag = 'smem constant byte address 0x4 - core index']
  #allocation1 [shape = 'u32[144,128]{1,0:T(1,128)}', space=vmem, size = 0x12000, scoped, tag = 'internal scratch']
  #allocation2 [shape = 'f32[8,32]{1,0:T(8,128)}', space=vmem, size = 0x1000, scoped, tag = 'scratch operand']
  %s0 = inlined_call_operand.hbm [shape: f32[8,20], index: 0, kind: input, shape index: {}]
  %s1 = inlined_call_operand.hbm [shape: f32[20,32], index: 1, kind: input, shape index: {}]
  %s2 = inlined_call_operand.hbm [shape: f32[8,32], index: 2, kind: output, shape index: {}]
  %s3 = sld [smem:[#allocation0]]
  $region34: #{tpu_custom_call.1} parent=0
    _
  %s5 = ssub.s32 1, %s3
  %s6 = scalar_select 0, %s5, %s3
  $region1: #{tpu_custom_call.1} parent=0
    #allocation3 [shape = 'u8[4096]{0}', space=vmem, size = 0x1000, scoped, tag = 'input window, operand 0, single buffered']
    #allocation4 [shape = 's32[1]{0}', space=sflag, size = 0x4, scoped, tag = 'scoped memory for tpu_custom_call.1']
    #allocation5 [shape = 's32[1]{0}', space=sflag, size = 0x4, scoped, tag = 'scoped memory for tpu_custom_call.1']
    #allocation6 [shape = 'u8[12288]{0}', space=vmem, size = 0x3000, scoped, tag = 'input window, operand 1, single buffered']
    #allocation7 [shape = 's32[1]{0}', space=sflag, size = 0x4, scoped, tag = 'scoped memory for tpu_custom_call.1']
    #allocation8 [shape = 'u8[4096]{0}', space=vmem, size = 0x1000, scoped, tag = 'output window, operand 0, single buffered']
    %7 = vsyncpa [#allocation4], 0
    %8 = vsyncpa [#allocation7], 0
    %9 = vsyncpa [#allocation5], 0
    // Predicated region
    $region2: #{tpu_custom_call.1} parent=1 // pred_check
      _
    $region3: #{tpu_custom_call.1} parent=1 // pred_check_branch
      %11 = sbr.rel (0) target = $region5
    $region4: #{tpu_custom_call.1} parent=1 // pred_region
      %s13 = ssub.s32 128, 128
      %14 = vsyncadd [#allocation4], %s13
      %s16 = sshll.u32 [#allocation3], 4
      %s17 = int_to_ptr.vmem [resolvable:$true] %s16
      %19 = dma.hbm_to_vmem [thread:$0]  %s0, 128, %s17, [#allocation4]
    $region5: #{tpu_custom_call.1} parent=1 // pred_fallthru
      _
    // Predicated region
    $region6: #{tpu_custom_call.1} parent=1 // pred_check
      _
    $region7: #{tpu_custom_call.1} parent=1 // pred_check_branch
      %21 = sbr.rel (0) target = $region9
    $region8: #{tpu_custom_call.1} parent=1 // pred_region
      %s23 = ssub.s32 384, 384
      %24 = vsyncadd [#allocation7], %s23
      %s25 = sshll.u32 [#allocation6], 4
      %s26 = int_to_ptr.vmem [resolvable:$true] %s25
      %31 = dma.hbm_to_vmem [thread:$0]  %s1, 384, %s26, [#allocation7], 128, 128, 8
    $region9: #{tpu_custom_call.1} parent=1 // pred_fallthru
      _
    // Predicated region
    $region10: #{tpu_custom_call.1} parent=1 // pred_check
      _
    $region11: #{tpu_custom_call.1} parent=1 // pred_check_branch
      %33 = sbr.rel (0) target = $region13
    $region12: #{tpu_custom_call.1} parent=1 // pred_region
      %34 = dma.done [#allocation4], 128
    $region13: #{tpu_custom_call.1} parent=1 // pred_fallthru
      _
    // Predicated region
    $region14: #{tpu_custom_call.1} parent=1 // pred_check
      _
    $region15: #{tpu_custom_call.1} parent=1 // pred_check_branch
      %36 = sbr.rel (0) target = $region17
    $region16: #{tpu_custom_call.1} parent=1 // pred_region
      %37 = dma.done [#allocation7], 384
    $region17: #{tpu_custom_call.1} parent=1 // pred_fallthru
      _
    %p38 = scmp.eq.s32.totalorder 0, 0
    // Predicated region
    $region18: #{tpu_custom_call.1} parent=1 // pred_check
      %p39 = pneg %p38
    $region19: #{tpu_custom_call.1} parent=1 // pred_check_branch
      %41 = sbr.rel (%p39) target = $region21
    $region20: #{tpu_custom_call.1} parent=1 // pred_region
      %vm42 = vcmask 261120
      %43 = vst.msk [vmem:[#allocation2] sm:$0xff] %vm42, 0.0
    $region21: #{tpu_custom_call.1} parent=1 // pred_fallthru
      _
    %v44 = vld [vmem:[#allocation2] sm:$0xff]
    %v45 = vld [vmem:[#allocation3] sm:$0xff]
    %v46 = vld [vmem:[#allocation6] sm:$0xff]
    %v47 = vld [vmem:[#allocation6 + $0x8] sm:$0xff]
    %v48 = vld [vmem:[#allocation6 + $0x10] sm:$0xf]
    %vm49 = vcmask 162816
    %v51 = vsel %vm49, %v45, 0
    %vm53 = vcmask 1043456
    %v55 = vsel %vm53, %v48, 0
    %57 = vmatprep.subr.mxu0 0.0
    %58 = vmatpush1.msra.mxu0 %v46
    %59 = vmatprep.subr.mxu0 0.0
    %60 = vmatpush1.msra.mxu0 %v47
    %61 = vmatprep.subr.mxu0 0.0
    %62 = vmatpush1.msra.mxu0 %v55
    %63 = vmatprep.subr.mxu0 0.0
    %64 = vmatpush1.msra.mxu0 0.0
    %65 = vmatprep.subr.mxu0 0.0
    %66 = vmatpush1.msra.mxu0 0.0
    %67 = vmatprep.subr.mxu0 0.0
    %68 = vmatpush1.msra.mxu0 0.0
    %69 = vmatprep.subr.mxu0 0.0
    %70 = vmatpush1.msra.mxu0 0.0
    %71 = vmatprep.subr.mxu0 0.0
    %72 = vmatpush1.msra.mxu0 0.0
    %73 = vmatprep.subr.mxu0 0.0
    %74 = vmatpush1.msra.mxu0 0.0
    %75 = vmatprep.subr.mxu0 0.0
    %76 = vmatpush1.msra.mxu0 0.0
    %77 = vmatprep.subr.mxu0 0.0
    %78 = vmatpush1.msra.mxu0 0.0
    %79 = vmatprep.subr.mxu0 0.0
    %80 = vmatpush1.msra.mxu0 0.0
    %81 = vmatprep.subr.mxu0 0.0
    %82 = vmatpush1.msra.mxu0 0.0
    %83 = vmatprep.subr.mxu0 0.0
    %84 = vmatpush1.msra.mxu0 0.0
    %85 = vmatprep.subr.mxu0 0.0
    %86 = vmatpush1.msra.mxu0 0.0
    %87 = vmatprep.subr.mxu0 0.0
    %88 = vmatpush1.msra.mxu0 0.0
    %89 = vmatprep.subr.mxu0 0.0
    %90 = vmatpush1.msra.mxu0 0.0
    %91 = vmatprep.subr.mxu0 0.0
    %92 = vmatpush1.msra.mxu0 0.0
    %93 = vmatprep.subr.mxu0 0.0
    %94 = vmatpush1.msra.mxu0 0.0
    %95 = vmatprep.subr.mxu0 0.0
    %96 = vmatpush1.msra.mxu0 0.0
    %97 = vmatprep.subr.mxu0 0.0
    %98 = vmatpush1.msra.mxu0 0.0
    %99 = vmatprep.subr.mxu0 0.0
    %100 = vmatpush1.msra.mxu0 0.0
    %101 = vmatprep.subr.mxu0 0.0
    %102 = vmatpush1.msra.mxu0 0.0
    %103 = vmatprep.subr.mxu0 0.0
    %104 = vmatpush1.msra.mxu0 0.0
    %105 = vmatprep.subr.mxu0 0.0
    %106 = vmatpush1.msra.mxu0 0.0
    %107 = vmatprep.subr.mxu0 0.0
    %108 = vmatpush1.msra.mxu0 0.0
    %109 = vmatprep.subr.mxu0 0.0
    %110 = vmatpush1.msra.mxu0 0.0
    %111 = vmatprep.subr.mxu0 0.0
    %112 = vmatpush1.msra.mxu0 0.0
    %113 = vmatprep.subr.mxu0 0.0
    %114 = vmatpush1.msra.mxu0 0.0
    %115 = vmatprep.subr.mxu0 0.0
    %116 = vmatpush1.msra.mxu0 0.0
    %117 = vmatprep.subr.mxu0 0.0
    %118 = vmatpush1.msra.mxu0 0.0
    %119 = vmatprep.subr.mxu0 0.0
    %120 = vmatpush1.msra.mxu0 0.0
    %121 = vmatprep.mubr.f32.mxu0 0.0
    %122 = vmatmul.mubr.f32.gmra.mrb[0].mxu0 %v51
    %v123 = vpop.f32.mrb[0].mxu0
    %v124 = vadd.f32 0.0, %v123
    %v125 = vpop.f32.mrb[0].mxu0
    %126 = vdwg.mxu0
    %v127 = vadd.f32 %v44, %v124
    %vm128 = vcmask 261120
    %129 = vst.msk [vmem:[#allocation2] sm:$0xff] %vm128, %v127
    // Predicated region
    $region22: #{tpu_custom_call.1} parent=1 // pred_check
      %p130 = pneg %p38
    $region23: #{tpu_custom_call.1} parent=1 // pred_check_branch
      %132 = sbr.rel (%p130) target = $region25
    $region24: #{tpu_custom_call.1} parent=1 // pred_region
      %v133 = vld [vmem:[#allocation2] sm:$0xff]
      %134 = vst.msk [vmem:[#allocation8] sm:$0xff] %vm128, %v133
    $region25: #{tpu_custom_call.1} parent=1 // pred_fallthru
      _
    // Predicated region
    $region26: #{tpu_custom_call.1} parent=1 // pred_check
      _
    $region27: #{tpu_custom_call.1} parent=1 // pred_check_branch
      %136 = sbr.rel (0) target = $region29
    $region28: #{tpu_custom_call.1} parent=1 // pred_region
      %s138 = ssub.s32 128, 128
      %139 = vsyncadd [#allocation5], %s138
      %s141 = sshll.u32 [#allocation8], 4
      %s142 = int_to_ptr.vmem [resolvable:$true] %s141
      %144 = dma.vmem_to_hbm [thread:$0]  %s142, 128, %s2, [#allocation5]
    $region29: #{tpu_custom_call.1} parent=1 // pred_fallthru
      _
    // Predicated region
    $region30: #{tpu_custom_call.1} parent=1 // pred_check
      _
    $region31: #{tpu_custom_call.1} parent=1 // pred_check_branch
      %146 = sbr.rel (0) target = $region33
    $region32: #{tpu_custom_call.1} parent=1 // pred_region
      %147 = dma.done [#allocation5], 128
    $region33: #{tpu_custom_call.1} parent=1 // pred_fallthru
      _
    %148 = vsyncpa [#allocation4], 1
    %149 = vsyncpa [#allocation7], 1
    %150 = vsyncpa [#allocation5], 1

</llo_original>
